<compile_context>
chip_gen: v7x
topology: tpu7x:2x2x1
jax: 0.10.0
libtpu: 0.0.40
codegen_flags: <defaults>
</compile_context>

<pallas_src>
import functools
import math

import jax
import jax.numpy as jnp
from jax.experimental import pallas as pl
from jax.experimental.pallas import tpu as pltpu

NEG_INF = -1e9
BN_EPS = 1e-5


# ----------------------------------------------------------------------------
# Kernel A: fused (BN + ELU) -> batched all-head projection.
#   refs: h, bn, W_big, wl  ->  ft, [res], a2, a1
# ----------------------------------------------------------------------------
def proj_kernel(*refs, apply_bn, has_res, H, D, bn_eps):
    if has_res:
        h_ref, bn_ref, wbig_ref, wl_ref, ft_ref, res_ref, a2_ref, a1_ref = refs
    else:
        h_ref, bn_ref, wbig_ref, wl_ref, ft_ref, a2_ref, a1_ref = refs
        res_ref = None

    h = h_ref[...]                                          # (TM, Fin) f32
    if apply_bn:
        # Previous layer's BatchNorm1d (training batch stats, gamma=1, beta=0)
        # + ELU fused into this layer's input load.
        mean = bn_ref[0:1, :]
        var = bn_ref[1:2, :]
        h = (h - mean) * jax.lax.rsqrt(var + bn_eps)
        h = jnp.where(h > 0, h, jnp.exp(jnp.minimum(h, 0.0)) - 1.0)   # ELU

    hb = h.astype(jnp.bfloat16)                             # bf16 MXU operands
    proj = jnp.dot(hb, wbig_ref[...], preferred_element_type=jnp.float32)

    HD = H * D
    ft_ref[...] = proj[:, :HD]
    off = HD
    if has_res:
        res_ref[...] = proj[:, off:off + HD]
        off += HD
    a2_ref[...] = proj[:, off:off + H]

    # a1[h, u] = act(h)[u, :] . wl[h, :]  -- already src-row oriented (H, TM).
    a1_ref[...] = jax.lax.dot_general(
        wl_ref[...], hb, (((1,), (1,)), ((), ())),
        preferred_element_type=jnp.float32)


# ----------------------------------------------------------------------------
# Kernel B: masked attention softmax + aggregation over one dst-row block.
#   refs: ft(full), a1(full), a2(block), [res(block)], mask(block) -> out(block)
# ----------------------------------------------------------------------------
def attn_kernel(*refs, H, D, alpha, has_res, last):
    if has_res:
        ft_ref, a1_ref, a2_ref, res_ref, mask_ref, out_ref = refs
    else:
        ft_ref, a1_ref, a2_ref, mask_ref, out_ref = refs
        res_ref = None

    # int8 adjacency block -> additive mask bias (0 on edge, -1e9 off edge).
    bias = (1.0 - mask_ref[...].astype(jnp.float32)) * NEG_INF   # (TM, NP)
    a1 = a1_ref[...]                                             # (H, NP)
    a2 = a2_ref[...]                                             # (TM, H)
    ft_bf = ft_ref[...].astype(jnp.bfloat16)                     # (NP, HD)

    acc = None
    for hh in range(H):                                     # unrolled, H small
        # e[dst, src] = leaky_relu(a1[src] + a2[dst]); temperature pre-folded.
        e = a2[:, hh:hh + 1] + a1[hh:hh + 1, :]              # (TM, NP)
        e = jnp.maximum(e, alpha * e) + bias                 # LeakyReLU + mask
        m = jnp.max(e, axis=-1, keepdims=True)
        p = jnp.exp(e - m)                                   # masked -> ~0
        z = jnp.sum(p, axis=-1, keepdims=True)               # >= 1 entry
        o = jnp.dot(p.astype(jnp.bfloat16), ft_bf[:, hh * D:(hh + 1) * D],
                    preferred_element_type=jnp.float32)      # (TM, D)
        o = o * pl.reciprocal(z, approx=True)
        if has_res:
            o = o + res_ref[:, hh * D:(hh + 1) * D]
        if last:
            acc = o if acc is None else acc + o
        else:
            out_ref[:, hh * D:(hh + 1) * D] = o.astype(out_ref.dtype)

    if last:
        out_ref[...] = (acc * (1.0 / H)).astype(out_ref.dtype)   # mean(heads)


# ----------------------------------------------------------------------------
# One-time per-layer weight prepack (hoisted out of the forward path).
# ----------------------------------------------------------------------------
def prepack_layer(layer, temperature):
    assert temperature > 0.0, "temperature fold relies on T > 0"
    W = layer["W"]                                          # (H, Fin, D)
    al, ar = layer["attn_l"], layer["attn_r"]               # (H, D)
    res_mode = layer["res_mode"]
    H, Fin, D = W.shape
    HD = H * D

    W_all = jnp.transpose(W, (1, 0, 2)).reshape(Fin, HD)    # head-major cols
    blocks = [W_all]
    has_res = res_mode != "none"
    if res_mode == "fc":
        blocks.append(jnp.transpose(layer["Wres"], (1, 0, 2)).reshape(Fin, HD))
    elif res_mode == "identity":
        assert Fin == D
        blocks.append(jnp.tile(jnp.eye(Fin, dtype=jnp.float32), (1, H)))
    # Fold attn_r (and temperature) into extra columns of the big matmul.
    blocks.append(jnp.einsum("hfd,hd->fh", W, ar) * temperature)   # (Fin, H)
    W_big = jnp.concatenate(blocks, axis=1).astype(jnp.bfloat16)
    wl = (jnp.einsum("hfd,hd->hf", W, al) * temperature).astype(jnp.bfloat16)
    return dict(W_big=W_big, wl=wl, H=H, D=D, has_res=has_res)


# ----------------------------------------------------------------------------
# One GraphAttention layer = two gridded pallas_calls.
# ----------------------------------------------------------------------------
def gat_layer_forward(h, pre, mask, *, alpha, last, bn_stats, apply_bn, tm):
    NP, Fin = h.shape
    H, D = pre["H"], pre["D"]
    HD = H * D
    has_res = pre["has_res"]
    assert NP % tm == 0
    grid = (NP // tm,)

    cparams = pltpu.CompilerParams(
        dimension_semantics=("parallel",),
        vmem_limit_bytes=32 * 1024 * 1024)

    def row_spec(cols):
        return pl.BlockSpec((tm, cols), lambda i: (i, 0))

    def full_spec(shape):
        return pl.BlockSpec(shape, lambda i: (0,) * len(shape))

    bn = bn_stats if apply_bn else jnp.zeros((2, Fin), jnp.float32)

    # ---- stage 1: fused BN/ELU + projection (ft / res / a2 / a1) ----
    in_specs = [row_spec(Fin), full_spec((2, Fin)),
                full_spec(pre["W_big"].shape), full_spec(pre["wl"].shape)]
    out_shape = [jax.ShapeDtypeStruct((NP, HD), jnp.float32)]
    out_specs = [row_spec(HD)]
    if has_res:
        out_shape.append(jax.ShapeDtypeStruct((NP, HD), jnp.float32))
        out_specs.append(row_spec(HD))
    out_shape += [jax.ShapeDtypeStruct((NP, H), jnp.float32),
                  jax.ShapeDtypeStruct((H, NP), jnp.float32)]
    out_specs += [row_spec(H), pl.BlockSpec((H, tm), lambda i: (0, i))]

    outs = pl.pallas_call(
        functools.partial(proj_kernel, apply_bn=apply_bn, has_res=has_res,
                          H=H, D=D, bn_eps=BN_EPS),
        grid=grid, in_specs=in_specs, out_specs=tuple(out_specs),
        out_shape=tuple(out_shape), compiler_params=cparams,
    )(h, bn, pre["W_big"], pre["wl"])
    if has_res:
        ft, res, a2, a1 = outs
    else:
        ft, a2, a1 = outs
        res = None

    # ---- stage 2: masked softmax + aggregation over dst-row blocks ----
    out_cols = D if last else HD
    in_specs2 = [full_spec((NP, HD)), full_spec((H, NP)), row_spec(H)]
    args2 = [ft, a1, a2]
    if has_res:
        in_specs2.append(row_spec(HD))
        args2.append(res)
    in_specs2.append(row_spec(NP))            # int8 mask streamed by dst block
    args2.append(mask)

    return pl.pallas_call(
        functools.partial(attn_kernel, H=H, D=D, alpha=alpha,
                          has_res=has_res, last=last),
        grid=grid, in_specs=in_specs2,
        out_specs=row_spec(out_cols),
        out_shape=jax.ShapeDtypeStruct((NP, out_cols), jnp.float32),
        compiler_params=cparams,
    )(*args2)


# ----------------------------------------------------------------------------
# Parameter init (deterministic, xavier-normal-style with gain 1.414).
# ----------------------------------------------------------------------------
def _xavier_std(fan_in, fan_out, gain=1.414):
    return gain * math.sqrt(2.0 / (fan_in + fan_out))


def init_gat_params(key, num_layers, in_dim, num_hidden, num_classes, heads,
                    residual):
    specs = [(in_dim, num_hidden, heads[0], False)]
    for l in range(1, num_layers):
        specs.append((num_hidden * heads[l - 1], num_hidden, heads[l], residual))
    specs.append((num_hidden * heads[-2], num_classes, heads[-1], residual))

    params = []
    for (fin, dout, H, res) in specs:
        key, k1, k2, k3, k4 = jax.random.split(key, 5)
        W = jax.random.normal(k1, (H, fin, dout), jnp.float32) * _xavier_std(
            fin, H * dout)
        al = jax.random.normal(k2, (H, dout), jnp.float32) * _xavier_std(dout, H)
        ar = jax.random.normal(k3, (H, dout), jnp.float32) * _xavier_std(dout, H)
        if res and fin != dout:
            Wres = jax.random.normal(k4, (H, fin, dout), jnp.float32) * \
                _xavier_std(fin, H * dout)
            res_mode = "fc"
        elif res:
            Wres, res_mode = None, "identity"
        else:
            Wres, res_mode = None, "none"
        params.append(dict(W=W, attn_l=al, attn_r=ar, Wres=Wres,
                           res_mode=res_mode))
    return params


# ----------------------------------------------------------------------------
# Graph preprocessing: int8 adjacency mask, padded to NP nodes.
#   mask[dst, src] = 1 if edge src -> dst else 0; padded rows get a self-loop
#   so the softmax denominator is never zero.
# ----------------------------------------------------------------------------
def build_adj_mask(adj, NP):
    N = adj.shape[0]
    m = jnp.zeros((NP, NP), jnp.int8).at[:N, :N].set(adj.astype(jnp.int8))
    idx = jnp.arange(NP)
    pad_self = (idx[:, None] == idx[None, :]) & (idx[:, None] >= N)
    return jnp.where(pad_self, jnp.int8(1), m)


def gat_forward(prepacked, x_pad, mask, *, alpha, n_valid, tm):
    num_layers = len(prepacked) - 1
    h = x_pad
    bn_stats = None
    apply_bn = False
    for l in range(num_layers):
        h = gat_layer_forward(h, prepacked[l], mask, alpha=alpha, last=False,
                              bn_stats=bn_stats, apply_bn=apply_bn, tm=tm)
        # BatchNorm1d batch statistics over valid rows only (biased variance,
        # torch training-mode); normalize + ELU are fused into the next
        # layer's projection kernel.
        valid = h[:n_valid]
        mean = jnp.mean(valid, axis=0)
        var = jnp.mean(jnp.square(valid - mean), axis=0)
        bn_stats = jnp.stack([mean, var], axis=0)
        apply_bn = True
    logits = gat_layer_forward(h, prepacked[-1], mask, alpha=alpha, last=True,
                               bn_stats=bn_stats, apply_bn=apply_bn, tm=tm)
    return logits[:n_valid]


if __name__ == "__main__":
    # Small deterministic config; NP > TM so the dst-block grid is exercised.
    N = 200           # valid nodes
    NP = 256          # padded node count (multiple of TM)
    TM = 128          # dst-row tile
    in_dim = 16
    num_hidden = 32
    num_classes = 8
    num_layers = 2
    heads = [4, 4, 2]
    alpha = 0.2
    temperature = 0.5
    residual = True

    key = jax.random.PRNGKey(0)
    k_x, k_adj, k_params = jax.random.split(key, 3)

    x = jax.random.normal(k_x, (N, in_dim), jnp.float32)
    # adj[dst, src]: random sparse-ish graph + self-loops.
    adj = (jax.random.uniform(k_adj, (N, N)) < 0.15).astype(jnp.float32)
    adj = jnp.maximum(adj, jnp.eye(N, dtype=jnp.float32))

    x_pad = jnp.zeros((NP, in_dim), jnp.float32).at[:N].set(x)
    mask = build_adj_mask(adj, NP)

    params = init_gat_params(k_params, num_layers, in_dim, num_hidden,
                             num_classes, heads, residual)
    prepacked = [prepack_layer(p, temperature) for p in params]   # hoisted

    logits = gat_forward(prepacked, x_pad, mask, alpha=alpha, n_valid=N, tm=TM)
    logits = jax.block_until_ready(logits)

    assert logits.shape == (N, num_classes), logits.shape
    assert bool(jnp.all(jnp.isfinite(logits)))
    print("KERNEL_OK")
</pallas_src>

<mosaic_0001>
module attributes {stable_mosaic.version = 11 : i64} {
  func.func @proj_kernel(%arg0: i32, %arg1: memref<128x16xf32, #tpu.memory_space<vmem>>, %arg2: memref<2x16xf32, #tpu.memory_space<vmem>>, %arg3: memref<16x132xbf16, #tpu.memory_space<vmem>>, %arg4: memref<4x16xbf16, #tpu.memory_space<vmem>>, %arg5: memref<128x128xf32, #tpu.memory_space<vmem>>, %arg6: memref<128x4xf32, #tpu.memory_space<vmem>>, %arg7: memref<4x128xf32, #tpu.memory_space<vmem>>) attributes {dimension_semantics = [#tpu.dimension_semantics<parallel>], iteration_bounds = array<i64: 2>, scalar_prefetch = 0 : i64, scratch_operands = 0 : i64, tpu.core_type = #tpu.core_type<tc>, window_params = [{transform_indices = @transform_0, window_bounds = array<i64: 128, 16>}, {pipeline_mode = #tpu.pipeline_mode<synchronous>, transform_indices = @transform_1, window_bounds = array<i64: 2, 16>}, {pipeline_mode = #tpu.pipeline_mode<synchronous>, transform_indices = @transform_2, window_bounds = array<i64: 16, 132>}, {pipeline_mode = #tpu.pipeline_mode<synchronous>, transform_indices = @transform_3, window_bounds = array<i64: 4, 16>}, {transform_indices = @transform_4, window_bounds = array<i64: 128, 128>}, {transform_indices = @transform_5, window_bounds = array<i64: 128, 4>}, {transform_indices = @transform_6, window_bounds = array<i64: 4, 128>}]} {
    %c0 = arith.constant 0 : index
    %c0_0 = arith.constant 0 : index
    %0 = vector.load %arg1[%c0, %c0_0] : memref<128x16xf32, #tpu.memory_space<vmem>>, vector<128x16xf32>
    %1 = arith.truncf %0 : vector<128x16xf32> to vector<128x16xbf16>
    %c0_1 = arith.constant 0 : index
    %c0_2 = arith.constant 0 : index
    %2 = vector.load %arg3[%c0_1, %c0_2] : memref<16x132xbf16, #tpu.memory_space<vmem>>, vector<16x132xbf16>
    %cst = arith.constant dense<0.000000e+00> : vector<128x132xf32>
    %3 = tpu.matmul %1, %2, %cst {dimension_numbers = #tpu.dot_dimension_numbers<[1], [0], [0], [1], [0, 0, 1, 1], [], []>} : vector<128x16xbf16>, vector<16x132xbf16>, vector<128x132xf32> -> vector<128x132xf32>
    %4 = vector.extract_strided_slice %3 {offsets = [0, 0], sizes = [128, 128], strides = [1, 1]} : vector<128x132xf32> to vector<128x128xf32>
    %c0_3 = arith.constant 0 : index
    %c0_4 = arith.constant 0 : index
    %5 = vector.load %arg5[%c0_3, %c0_4] : memref<128x128xf32, #tpu.memory_space<vmem>>, vector<128x128xf32>
    tpu.vector_store %arg5[%c0_3, %c0_4], %4 {strides = array<i32>} : memref<128x128xf32, #tpu.memory_space<vmem>>, vector<128x128xf32>,
    %6 = vector.extract_strided_slice %3 {offsets = [0, 128], sizes = [128, 4], strides = [1, 1]} : vector<128x132xf32> to vector<128x4xf32>
    %c0_5 = arith.constant 0 : index
    %c0_6 = arith.constant 0 : index
    %7 = vector.load %arg6[%c0_5, %c0_6] : memref<128x4xf32, #tpu.memory_space<vmem>>, vector<128x4xf32>
    tpu.vector_store %arg6[%c0_5, %c0_6], %6 {strides = array<i32>} : memref<128x4xf32, #tpu.memory_space<vmem>>, vector<128x4xf32>,
    %c0_7 = arith.constant 0 : index
    %c0_8 = arith.constant 0 : index
    %8 = vector.load %arg4[%c0_7, %c0_8] : memref<4x16xbf16, #tpu.memory_space<vmem>>, vector<4x16xbf16>
    %cst_9 = arith.constant dense<0.000000e+00> : vector<4x128xf32>
    %9 = tpu.matmul %8, %1, %cst_9 {dimension_numbers = #tpu.dot_dimension_numbers<[1], [1], [0], [0], [0, 0, 1, 0], [], []>} : vector<4x16xbf16>, vector<128x16xbf16>, vector<4x128xf32> -> vector<4x128xf32>
    %c0_10 = arith.constant 0 : index
    %c0_11 = arith.constant 0 : index
    %10 = vector.load %arg7[%c0_10, %c0_11] : memref<4x128xf32, #tpu.memory_space<vmem>>, vector<4x128xf32>
    tpu.vector_store %arg7[%c0_10, %c0_11], %9 {strides = array<i32>} : memref<4x128xf32, #tpu.memory_space<vmem>>, vector<4x128xf32>,
    return
  }
  func.func @transform_0(%arg0: i32) -> (i32, i32) {
    %c0_i32 = arith.constant 0 : i32
    %c0_i32_0 = arith.constant 0 : i32
    return %arg0, %c0_i32 : i32, i32
  }
  func.func @transform_1(%arg0: i32) -> (i32, i32) {
    %c0_i32 = arith.constant 0 : i32
    %c0_i32_0 = arith.constant 0 : i32
    %c0_i32_1 = arith.constant 0 : i32
    return %c0_i32, %c0_i32_0 : i32, i32
  }
  func.func @transform_2(%arg0: i32) -> (i32, i32) {
    %c0_i32 = arith.constant 0 : i32
    %c0_i32_0 = arith.constant 0 : i32
    %c0_i32_1 = arith.constant 0 : i32
    return %c0_i32, %c0_i32_0 : i32, i32
  }
  func.func @transform_3(%arg0: i32) -> (i32, i32) {
    %c0_i32 = arith.constant 0 : i32
    %c0_i32_0 = arith.constant 0 : i32
    %c0_i32_1 = arith.constant 0 : i32
    return %c0_i32, %c0_i32_0 : i32, i32
  }
  func.func @transform_4(%arg0: i32) -> (i32, i32) {
    %c0_i32 = arith.constant 0 : i32
    %c0_i32_0 = arith.constant 0 : i32
    return %arg0, %c0_i32 : i32, i32
  }
  func.func @transform_5(%arg0: i32) -> (i32, i32) {
    %c0_i32 = arith.constant 0 : i32
    %c0_i32_0 = arith.constant 0 : i32
    return %arg0, %c0_i32 : i32, i32
  }
  func.func @transform_6(%arg0: i32) -> (i32, i32) {
    %c0_i32 = arith.constant 0 : i32
    %c0_i32_0 = arith.constant 0 : i32
    return %c0_i32, %arg0 : i32, i32
  }
}

</mosaic_0001>

<llo_original>
// kernel: tpu_custom_call.1
$region0: #{tpu_custom_call.1}
  #allocation0 [shape = 'u32[]', space=smem, size = 0x4, offset = 0x4, fixed_abs, tag = 'smem constant byte address 0x4 - core index']
  #allocation1 [shape = 'u32[144,128]{1,0:T(1,128)}', space=vmem, size = 0x12000, scoped, tag = 'internal scratch']
  %s0 = inlined_call_operand.vmem [shape: f32[256,16], index: 0, kind: input, shape index: {}]
  %s1 = inlined_call_operand.vmem [shape: f32[2,16], index: 1, kind: input, shape index: {}]
  %s2 = inlined_call_operand.vmem [shape: bf16[16,132], index: 2, kind: input, shape index: {}]
  %s3 = inlined_call_operand.vmem [shape: bf16[4,16], index: 3, kind: input, shape index: {}]
  %s4 = inlined_call_operand.hbm [shape: f32[256,128], index: 4, kind: output, shape index: {0}]
  %s5 = inlined_call_operand.vmem [shape: f32[256,4], index: 5, kind: output, shape index: {1}]
  %s6 = inlined_call_operand.hbm [shape: f32[4,256], index: 6, kind: output, shape index: {2}]
  %7 = xla_tuple %s4, %s5, %s6
  %s8 = sld [smem:[#allocation0]]
  $region65: #{tpu_custom_call.1} parent=0
    _
  %s10 = ssub.s32 1, %s8
  %s11 = scalar_select 0, %s10, %s8
  $region1: #{tpu_custom_call.1} parent=0
    #allocation2 [shape = 'u8[131072]{0}', space=vmem, size = 0x20000, scoped, tag = 'output window, operand 0']
    #allocation3 [shape = 's32[2]{0}', space=sflag, size = 0x8, scoped, tag = 'scoped memory for tpu_custom_call.1']
    #allocation4 [shape = 'u8[4096]{0}', space=vmem, size = 0x1000, scoped, tag = 'output window, operand 2']
    #allocation5 [shape = 's32[2]{0}', space=sflag, size = 0x8, scoped, tag = 'scoped memory for tpu_custom_call.1']
    %12 = vsyncpa [#allocation3], 0
    %s13 = scalar_lea.sflag [#allocation3], 1
    %14 = vsyncpa %s13, 0
    %15 = vsyncpa [#allocation5], 0
    %s16 = scalar_lea.sflag [#allocation5], 1
    %17 = vsyncpa %s16, 0
    loop: start=0, step=1, limit=4
    $region2: #{tpu_custom_call.1} parent=1 // loop_pre_header
      _
    $region3: #{tpu_custom_call.1} parent=1 // loop_header
      %s19 = sphi 0, %s23
      %p20 = scmp.ge.s32.totalorder %s19, 4
      %s29 = sphi 0, %s31
      %s32 = sphi 0, %s29
      %s33 = sphi 0, %s32
      %s49 = sphi 0, %s33
      %s53 = sphi 0, %s53
      %s55 = sphi 0, %s53
      %s56 = sphi 0, %s55
      %s70 = sphi 0, %s56
      %s74 = sphi 0, %s74
      %s76 = sphi 0, %s74
      %s77 = sphi 0, %s76
      %s91 = sphi 0, %s77
      %s95 = sphi 0, %s95
      %s97 = sphi 0, %s95
      %s98 = sphi 0, %s97
      %s112 = sphi 0, %s98
      %s118 = sphi 0, %s120
      %s121 = sphi 0, %s118
      %s122 = sphi 0, %s121
      %s138 = sphi 0, %s122
      %s144 = sphi 0, %s146
      %s147 = sphi 0, %s144
      %s148 = sphi 0, %s147
      %s164 = sphi 0, %s148
      %s170 = sphi 0, %s172
      %s173 = sphi 0, %s170
      %s174 = sphi 0, %s173
      %s190 = sphi 0, %s174
    $region4: #{tpu_custom_call.1} parent=1 // loop_header_branch
      %22 = sbr.rel (%p20) target = $region8
    $region5: #{tpu_custom_call.1} parent=1 // loop_body
      %s24 = ssub.s32 %s19, 1
      %s25 = ssub.s32 %s19, 2
      %s26 = sadd.s32 %s19, 1
      %s27 = ssub.s32 %s19, %s26
      %p28 = scmp.eq.s32.totalorder %s27, 0
      %s30 = sadd.s32 %s29, 1
      %s31 = scalar_select %p28, %s29, %s30
      %p34 = pneg %p28
      %p35 = scmp.eq.s32.totalorder %s19, 1
      %p36 = por %p34, %p35
      %p37 = scmp.ne.s32.totalorder %s29, %s32
      %p38 = scmp.eq.s32.totalorder %s19, 0
      %p39 = por %p37, %p38
      %p40 = scmp.ne.s32.totalorder %s29, %s32
      %p41 = scmp.eq.s32.totalorder %s24, 1
      %p42 = por %p40, %p41
      %p43 = scmp.ne.s32.totalorder %s32, %s33
      %p44 = scmp.eq.s32.totalorder %s24, 0
      %p45 = por %p43, %p44
      %p46 = scmp.ne.s32.totalorder %s32, %s33
      %p47 = scmp.eq.s32.totalorder %s25, 1
      %p48 = por %p46, %p47
      %p50 = scmp.ne.s32.totalorder %s33, %s49
      %p51 = scmp.eq.s32.totalorder %s25, 0
      %p52 = por %p50, %p51
      %s54 = sadd.s32 %s53, 1
      %p57 = scmp.eq.s32.totalorder %s19, 1
      %p58 = scmp.ne.s32.totalorder %s53, %s55
      %p59 = scmp.eq.s32.totalorder %s19, 0
      %p60 = por %p58, %p59
      %p61 = scmp.ne.s32.totalorder %s53, %s55
      %p62 = scmp.eq.s32.totalorder %s24, 1
      %p63 = por %p61, %p62
      %p64 = scmp.ne.s32.totalorder %s55, %s56
      %p65 = scmp.eq.s32.totalorder %s24, 0
      %p66 = por %p64, %p65
      %p67 = scmp.ne.s32.totalorder %s55, %s56
      %p68 = scmp.eq.s32.totalorder %s25, 1
      %p69 = por %p67, %p68
      %p71 = scmp.ne.s32.totalorder %s56, %s70
      %p72 = scmp.eq.s32.totalorder %s25, 0
      %p73 = por %p71, %p72
      %s75 = sadd.s32 %s74, 1
      %p78 = scmp.eq.s32.totalorder %s19, 1
      %p79 = scmp.ne.s32.totalorder %s74, %s76
      %p80 = scmp.eq.s32.totalorder %s19, 0
      %p81 = por %p79, %p80
      %p82 = scmp.ne.s32.totalorder %s74, %s76
      %p83 = scmp.eq.s32.totalorder %s24, 1
      %p84 = por %p82, %p83
      %p85 = scmp.ne.s32.totalorder %s76, %s77
      %p86 = scmp.eq.s32.totalorder %s24, 0
      %p87 = por %p85, %p86
      %p88 = scmp.ne.s32.totalorder %s76, %s77
      %p89 = scmp.eq.s32.totalorder %s25, 1
      %p90 = por %p88, %p89
      %p92 = scmp.ne.s32.totalorder %s77, %s91
      %p93 = scmp.eq.s32.totalorder %s25, 0
      %p94 = por %p92, %p93
      %s96 = sadd.s32 %s95, 1
      %p99 = scmp.eq.s32.totalorder %s19, 1
      %p100 = scmp.ne.s32.totalorder %s95, %s97
      %p101 = scmp.eq.s32.totalorder %s19, 0
      %p102 = por %p100, %p101
      %p103 = scmp.ne.s32.totalorder %s95, %s97
      %p104 = scmp.eq.s32.totalorder %s24, 1
      %p105 = por %p103, %p104
      %p106 = scmp.ne.s32.totalorder %s97, %s98
      %p107 = scmp.eq.s32.totalorder %s24, 0
      %p108 = por %p106, %p107
      %p109 = scmp.ne.s32.totalorder %s97, %s98
      %p110 = scmp.eq.s32.totalorder %s25, 1
      %p111 = por %p109, %p110
      %p113 = scmp.ne.s32.totalorder %s98, %s112
      %p114 = scmp.eq.s32.totalorder %s25, 0
      %p115 = por %p113, %p114
      %s116 = ssub.s32 %s19, %s26
      %p117 = scmp.eq.s32.totalorder %s116, 0
      %s119 = sadd.s32 %s118, 1
      %s120 = scalar_select %p117, %s118, %s119
      %p123 = pneg %p117
      %p124 = scmp.eq.s32.totalorder %s19, 1
      %p125 = por %p123, %p124
      %p126 = scmp.ne.s32.totalorder %s118, %s121
      %p127 = scmp.eq.s32.totalorder %s19, 0
      %p128 = por %p126, %p127
      %p129 = scmp.ne.s32.totalorder %s118, %s121
      %p130 = scmp.eq.s32.totalorder %s24, 1
      %p131 = por %p129, %p130
      %p132 = scmp.ne.s32.totalorder %s121, %s122
      %p133 = scmp.eq.s32.totalorder %s24, 0
      %p134 = por %p132, %p133
      %p135 = scmp.ne.s32.totalorder %s121, %s122
      %p136 = scmp.eq.s32.totalorder %s25, 1
      %p137 = por %p135, %p136
      %p139 = scmp.ne.s32.totalorder %s122, %s138
      %p140 = scmp.eq.s32.totalorder %s25, 0
      %p141 = por %p139, %p140
      %s142 = ssub.s32 %s19, %s26
      %p143 = scmp.eq.s32.totalorder %s142, 0
      %s145 = sadd.s32 %s144, 1
      %s146 = scalar_select %p143, %s144, %s145
      %p149 = pneg %p143
      %p150 = scmp.eq.s32.totalorder %s19, 1
      %p151 = por %p149, %p150
      %p152 = scmp.ne.s32.totalorder %s144, %s147
      %p153 = scmp.eq.s32.totalorder %s19, 0
      %p154 = por %p152, %p153
      %p155 = scmp.ne.s32.totalorder %s144, %s147
      %p156 = scmp.eq.s32.totalorder %s24, 1
      %p157 = por %p155, %p156
      %p158 = scmp.ne.s32.totalorder %s147, %s148
      %p159 = scmp.eq.s32.totalorder %s24, 0
      %p160 = por %p158, %p159
      %p161 = scmp.ne.s32.totalorder %s147, %s148
      %p162 = scmp.eq.s32.totalorder %s25, 1
      %p163 = por %p161, %p162
      %p165 = scmp.ne.s32.totalorder %s148, %s164
      %p166 = scmp.eq.s32.totalorder %s25, 0
      %p167 = por %p165, %p166
      %s168 = ssub.s32 %s19, %s26
      %p169 = scmp.eq.s32.totalorder %s168, 0
      %s171 = sadd.s32 %s170, 1
      %s172 = scalar_select %p169, %s170, %s171
      %p175 = pneg %p169
      %p176 = scmp.eq.s32.totalorder %s19, 1
      %p177 = por %p175, %p176
      %p178 = scmp.ne.s32.totalorder %s170, %s173
      %p179 = scmp.eq.s32.totalorder %s19, 0
      %p180 = por %p178, %p179
      %p181 = scmp.ne.s32.totalorder %s170, %s173
      %p182 = scmp.eq.s32.totalorder %s24, 1
      %p183 = por %p181, %p182
      %p184 = scmp.ne.s32.totalorder %s173, %s174
      %p185 = scmp.eq.s32.totalorder %s24, 0
      %p186 = por %p184, %p185
      %p187 = scmp.ne.s32.totalorder %s173, %s174
      %p188 = scmp.eq.s32.totalorder %s25, 1
      %p189 = por %p187, %p188
      %p191 = scmp.ne.s32.totalorder %s174, %s190
      %p192 = scmp.eq.s32.totalorder %s25, 0
      %p193 = por %p191, %p192
      %p194 = scmp.le.s32.totalorder 1, %s19
      %p195 = scmp.lt.s32.totalorder %s19, 3
      %p196 = pnand %p194, %p195
      %p197 = pneg %p196
      // Predicated region
      $region9: #{tpu_custom_call.1} parent=5 // pred_check
        _
      $region10: #{tpu_custom_call.1} parent=5 // pred_check_branch
        %199 = sbr.rel (%p196) target = $region12
      $region11: #{tpu_custom_call.1} parent=5 // pred_region
        %s200 = ssub.s32 %s19, 1
        // Predicated region
        $region13: #{tpu_custom_call.1} parent=11 // pred_check
          %p201 = pneg %p66
        $region14: #{tpu_custom_call.1} parent=11 // pred_check_branch
          %203 = sbr.rel (%p201) target = $region16
        $region15: #{tpu_custom_call.1} parent=11 // pred_region
          _
        $region16: #{tpu_custom_call.1} parent=11 // pred_fallthru
          _
        // Predicated region
        $region17: #{tpu_custom_call.1} parent=11 // pred_check
          %p204 = pneg %p87
        $region18: #{tpu_custom_call.1} parent=11 // pred_check_branch
          %206 = sbr.rel (%p204) target = $region20
        $region19: #{tpu_custom_call.1} parent=11 // pred_region
          _
        $region20: #{tpu_custom_call.1} parent=11 // pred_fallthru
          _
        // Predicated region
        $region21: #{tpu_custom_call.1} parent=11 // pred_check
          %p207 = pneg %p108
        $region22: #{tpu_custom_call.1} parent=11 // pred_check_branch
          %209 = sbr.rel (%p207) target = $region24
        $region23: #{tpu_custom_call.1} parent=11 // pred_region
          _
        $region24: #{tpu_custom_call.1} parent=11 // pred_fallthru
          _
      $region12: #{tpu_custom_call.1} parent=5 // pred_fallthru
        _
      %p210 = scmp.lt.s32.totalorder %s19, 2
      // Predicated region
      $region25: #{tpu_custom_call.1} parent=5 // pred_check
        %p211 = pneg %p210
      $region26: #{tpu_custom_call.1} parent=5 // pred_check_branch
        %213 = sbr.rel (%p211) target = $region28
      $region27: #{tpu_custom_call.1} parent=5 // pred_region
        // Predicated region
        $region29: #{tpu_custom_call.1} parent=27 // pred_check
          %p214 = pneg %p39
        $region30: #{tpu_custom_call.1} parent=27 // pred_check_branch
          %216 = sbr.rel (%p214) target = $region32
        $region31: #{tpu_custom_call.1} parent=27 // pred_region
          %s217 = smul.u32 16, %s19
          %p218 = scmp.lt.s32.totalorder %s217, 31
          %s219 = scalar_select %p218, %s217, 31
          %s220 = smul.addr %s219, 8
          %s221 = scalar_lea.vmem %s0, %s220
          %s222 = smul.u32 16, %s19
        $region32: #{tpu_custom_call.1} parent=27 // pred_fallthru
          _
      $region28: #{tpu_custom_call.1} parent=5 // pred_fallthru
        _
      %p223 = scmp.le.s32.totalorder 1, %s19
      %p224 = scmp.lt.s32.totalorder %s19, 3
      %p225 = pnand %p223, %p224
      %p226 = pneg %p225
      // Predicated region
      $region33: #{tpu_custom_call.1} parent=5 // pred_check
        _
      $region34: #{tpu_custom_call.1} parent=5 // pred_check_branch
        %228 = sbr.rel (%p225) target = $region36
      $region35: #{tpu_custom_call.1} parent=5 // pred_region
        %s229 = ssub.s32 %s19, 1
        %s230 = smul.u32 16, %s24
        %p231 = scmp.lt.s32.totalorder %s230, 31
        %s232 = scalar_select %p231, %s230, 31
        %s233 = smul.addr %s232, 8
        %s234 = scalar_lea.vmem %s0, %s233
        %p235 = pneg %p45
        %p236 = pneg %p42
        %p237 = pneg %p66
        %p238 = pneg %p63
        %p239 = pneg %p87
        %p240 = pneg %p84
        %p241 = pneg %p108
        %p242 = pneg %p105
        %p243 = pneg %p134
        %p244 = pneg %p131
        %s245 = sand.u32 %s121, 1
        %s246 = scalar_lea.sflag [#allocation3], %s245
        %s247 = sand.u32 %s121, 1
        %s248 = smul.addr %s247, 128
        %s249 = scalar_lea.vmem [#allocation2], %s248
        %p250 = pneg %p160
        %p251 = pneg %p157
        %s252 = smul.u32 16, %s24
        %p253 = scmp.lt.s32.totalorder %s252, 31
        %s254 = scalar_select %p253, %s252, 31
        %s255 = smul.addr %s254, 8
        %s256 = scalar_lea.vmem %s5, %s255
        %p257 = pneg %p186
        %p258 = pneg %p183
        %s259 = sand.u32 %s173, 1
        %s260 = scalar_lea.sflag [#allocation5], %s259
        %s261 = sand.u32 %s173, 1
        %s262 = smul.addr %s261, 4
        %s263 = scalar_lea.vmem [#allocation4], %s262
        %s264 = smul.u32 16, %s24
        %p265 = scmp.lt.s32.totalorder %s264, 31
        %s266 = scalar_select %p265, %s264, 31
        %s267 = smul.addr %s266, 8
        %s268 = scalar_lea.vmem %s0, %s267
        %s269 = smul.u32 16, %s24
        %s270 = smul.u32 16, %s24
        %s271 = smul.u32 16, %s24
        %p272 = scmp.lt.s32.totalorder %s271, 31
        %s273 = scalar_select %p272, %s271, 31
        %s274 = smul.addr %s273, 8
        %s275 = scalar_lea.vmem %s5, %s274
        %s276 = smul.u32 16, %s24
        %v278 = vld [vmem:[%s268] sm:$0xff]
        %v279 = vld [vmem:[%s268 + $0x8] sm:$0xff]
        %v280 = vld [vmem:[%s268 + $0x10] sm:$0xff]
        %v281 = vld [vmem:[%s268 + $0x18] sm:$0xff]
        %v282 = vld [vmem:[%s268 + $0x20] sm:$0xff]
        %v283 = vld [vmem:[%s268 + $0x28] sm:$0xff]
        %v284 = vld [vmem:[%s268 + $0x30] sm:$0xff]
        %v285 = vld [vmem:[%s268 + $0x38] sm:$0xff]
        %v286 = vld [vmem:[%s268 + $0x40] sm:$0xff]
        %v287 = vld [vmem:[%s268 + $0x48] sm:$0xff]
        %v288 = vld [vmem:[%s268 + $0x50] sm:$0xff]
        %v289 = vld [vmem:[%s268 + $0x58] sm:$0xff]
        %v290 = vld [vmem:[%s268 + $0x60] sm:$0xff]
        %v291 = vld [vmem:[%s268 + $0x68] sm:$0xff]
        %v292 = vld [vmem:[%s268 + $0x70] sm:$0xff]
        %v293 = vld [vmem:[%s268 + $0x78] sm:$0xff]
        %v294 = vpack.c.bf16 %v279, %v278
        %v295 = vpack.c.bf16 %v281, %v280
        %v296 = vpack.c.bf16 %v283, %v282
        %v297 = vpack.c.bf16 %v285, %v284
        %v298 = vpack.c.bf16 %v287, %v286
        %v299 = vpack.c.bf16 %v289, %v288
        %v300 = vpack.c.bf16 %v291, %v290
        %v301 = vpack.c.bf16 %v293, %v292
        %v302 = vld [vmem:[%s2] sm:$0xff]
        %v303 = vld [vmem:[%s2 + $0x8] sm:$0xff]
        %v306 = vunpack.c.l.b16 %v302
        %v307 = vunpack.c.h.b16 %v302
        %v308 = vunpack.c.l.b16 %v303
        %v309 = vunpack.c.h.b16 %v303
        %v310 = vpack.c.b16 %v308, %v306
        %v311 = vpack.c.b16 %v309, %v307
        %vm314 = vcmask 130048
        %v316 = vsel %vm314, %v294, 0
        %v319 = vsel %vm314, %v295, 0
        %v322 = vsel %vm314, %v296, 0
        %v325 = vsel %vm314, %v297, 0
        %v328 = vsel %vm314, %v298, 0
        %v331 = vsel %vm314, %v299, 0
        %v334 = vsel %vm314, %v300, 0
        %v337 = vsel %vm314, %v301, 0
        %339 = vmatprep.subr.bf16.mxu0 %v311
        %340 = vmatpush1.bf16.msra.mxu0 %v310
        %341 = vmatprep.subr.bf16.mxu0 0
        %342 = vmatpush1.bf16.msra.mxu0 0
        %343 = vmatprep.subr.bf16.mxu0 0
        %344 = vmatpush1.bf16.msra.mxu0 0
        %345 = vmatprep.subr.bf16.mxu0 0
        %346 = vmatpush1.bf16.msra.mxu0 0
        %347 = vmatprep.subr.bf16.mxu0 0
        %348 = vmatpush1.bf16.msra.mxu0 0
        %349 = vmatprep.subr.bf16.mxu0 0
        %350 = vmatpush1.bf16.msra.mxu0 0
        %351 = vmatprep.subr.bf16.mxu0 0
        %352 = vmatpush1.bf16.msra.mxu0 0
        %353 = vmatprep.subr.bf16.mxu0 0
        %354 = vmatpush1.bf16.msra.mxu0 0
        %355 = vmatprep.subr.bf16.mxu0 0
        %356 = vmatpush1.bf16.msra.mxu0 0
        %357 = vmatprep.subr.bf16.mxu0 0
        %358 = vmatpush1.bf16.msra.mxu0 0
        %359 = vmatprep.subr.bf16.mxu0 0
        %360 = vmatpush1.bf16.msra.mxu0 0
        %361 = vmatprep.subr.bf16.mxu0 0
        %362 = vmatpush1.bf16.msra.mxu0 0
        %363 = vmatprep.subr.bf16.mxu0 0
        %364 = vmatpush1.bf16.msra.mxu0 0
        %365 = vmatprep.subr.bf16.mxu0 0
        %366 = vmatpush1.bf16.msra.mxu0 0
        %367 = vmatprep.subr.bf16.mxu0 0
        %368 = vmatpush1.bf16.msra.mxu0 0
        %369 = vmatprep.subr.bf16.mxu0 0
        %370 = vmatpush1.bf16.msra.mxu0 0
        %371 = vmatprep.mubr.bf16.mxu0 0
        %372 = vmatmul.mubr.bf16.gmra.mrb[0].mxu0 %v316
        %v373 = vpop.f32.mrb[0].mxu0
        %v374 = vadd.f32 0.0, %v373
        %v375 = vpop.f32.mrb[0].mxu0
        %v376 = vadd.f32 0.0, %v375
        %v377 = vpop.f32.mrb[0].mxu0
        %v378 = vadd.f32 0.0, %v377
        %v379 = vpop.f32.mrb[0].mxu0
        %v380 = vadd.f32 0.0, %v379
        %381 = vmatprep.mubr.bf16.mxu0 0
        %382 = vmatmul.mubr.bf16.gmra.mrb[0].mxu0 %v319
        %v383 = vpop.f32.mrb[0].mxu0
        %v384 = vadd.f32 0.0, %v383
        %v385 = vpop.f32.mrb[0].mxu0
        %v386 = vadd.f32 0.0, %v385
        %v387 = vpop.f32.mrb[0].mxu0
        %v388 = vadd.f32 0.0, %v387
        %v389 = vpop.f32.mrb[0].mxu0
        %v390 = vadd.f32 0.0, %v389
        %391 = vmatprep.mubr.bf16.mxu0 0
        %392 = vmatmul.mubr.bf16.gmra.mrb[0].mxu0 %v322
        %v393 = vpop.f32.mrb[0].mxu0
        %v394 = vadd.f32 0.0, %v393
        %v395 = vpop.f32.mrb[0].mxu0
        %v396 = vadd.f32 0.0, %v395
        %v397 = vpop.f32.mrb[0].mxu0
        %v398 = vadd.f32 0.0, %v397
        %v399 = vpop.f32.mrb[0].mxu0
        %v400 = vadd.f32 0.0, %v399
        %401 = vmatprep.mubr.bf16.mxu0 0
        %402 = vmatmul.mubr.bf16.gmra.mrb[0].mxu0 %v325
        %v403 = vpop.f32.mrb[0].mxu0
        %v404 = vadd.f32 0.0, %v403
        %v405 = vpop.f32.mrb[0].mxu0
        %v406 = vadd.f32 0.0, %v405
        %v407 = vpop.f32.mrb[0].mxu0
        %v408 = vadd.f32 0.0, %v407
        %v409 = vpop.f32.mrb[0].mxu0
        %v410 = vadd.f32 0.0, %v409
        %411 = vmatprep.mubr.bf16.mxu0 0
        %412 = vmatmul.mubr.bf16.gmra.mrb[0].mxu0 %v328
        %v413 = vpop.f32.mrb[0].mxu0
        %v414 = vadd.f32 0.0, %v413
        %v415 = vpop.f32.mrb[0].mxu0
        %v416 = vadd.f32 0.0, %v415
        %v417 = vpop.f32.mrb[0].mxu0
        %v418 = vadd.f32 0.0, %v417
        %v419 = vpop.f32.mrb[0].mxu0
        %v420 = vadd.f32 0.0, %v419
        %421 = vmatprep.mubr.bf16.mxu0 0
        %422 = vmatmul.mubr.bf16.gmra.mrb[0].mxu0 %v331
        %v423 = vpop.f32.mrb[0].mxu0
        %v424 = vadd.f32 0.0, %v423
        %v425 = vpop.f32.mrb[0].mxu0
        %v426 = vadd.f32 0.0, %v425
        %v427 = vpop.f32.mrb[0].mxu0
        %v428 = vadd.f32 0.0, %v427
        %v429 = vpop.f32.mrb[0].mxu0
        %v430 = vadd.f32 0.0, %v429
        %431 = vmatprep.mubr.bf16.mxu0 0
        %432 = vmatmul.mubr.bf16.gmra.mrb[0].mxu0 %v334
        %v433 = vpop.f32.mrb[0].mxu0
        %v434 = vadd.f32 0.0, %v433
        %v435 = vpop.f32.mrb[0].mxu0
        %v436 = vadd.f32 0.0, %v435
        %v437 = vpop.f32.mrb[0].mxu0
        %v438 = vadd.f32 0.0, %v437
        %v439 = vpop.f32.mrb[0].mxu0
        %v440 = vadd.f32 0.0, %v439
        %441 = vmatprep.mubr.bf16.mxu0 0
        %442 = vmatmul.mubr.bf16.gmra.mrb[0].mxu0 %v337
        %v443 = vpop.f32.mrb[0].mxu0
        %v444 = vadd.f32 0.0, %v443
        %v445 = vpop.f32.mrb[0].mxu0
        %v446 = vadd.f32 0.0, %v445
        %v447 = vpop.f32.mrb[0].mxu0
        %v448 = vadd.f32 0.0, %v447
        %v449 = vpop.f32.mrb[0].mxu0
        %v450 = vadd.f32 0.0, %v449
        %451 = vdwg.mxu0
        %452 = vst [vmem:[%s249] sm:$0xff] %v374
        %453 = vst [vmem:[%s249 + $0x8] sm:$0xff] %v378
        %454 = vst [vmem:[%s249 + $0x10] sm:$0xff] %v384
        %455 = vst [vmem:[%s249 + $0x18] sm:$0xff] %v388
        %456 = vst [vmem:[%s249 + $0x20] sm:$0xff] %v394
        %457 = vst [vmem:[%s249 + $0x28] sm:$0xff] %v398
        %458 = vst [vmem:[%s249 + $0x30] sm:$0xff] %v404
        %459 = vst [vmem:[%s249 + $0x38] sm:$0xff] %v408
        %460 = vst [vmem:[%s249 + $0x40] sm:$0xff] %v414
        %461 = vst [vmem:[%s249 + $0x48] sm:$0xff] %v418
        %462 = vst [vmem:[%s249 + $0x50] sm:$0xff] %v424
        %463 = vst [vmem:[%s249 + $0x58] sm:$0xff] %v428
        %464 = vst [vmem:[%s249 + $0x60] sm:$0xff] %v434
        %465 = vst [vmem:[%s249 + $0x68] sm:$0xff] %v438
        %466 = vst [vmem:[%s249 + $0x70] sm:$0xff] %v444
        %467 = vst [vmem:[%s249 + $0x78] sm:$0xff] %v448
        %vm468 = vcmask 31744
        %469 = vst.msk [vmem:[%s275] sm:$0xff] %vm468, %v376
        %470 = vst.msk [vmem:[%s275 + $0x8] sm:$0xff] %vm468, %v380
        %471 = vst.msk [vmem:[%s275 + $0x10] sm:$0xff] %vm468, %v386
        %472 = vst.msk [vmem:[%s275 + $0x18] sm:$0xff] %vm468, %v390
        %473 = vst.msk [vmem:[%s275 + $0x20] sm:$0xff] %vm468, %v396
        %474 = vst.msk [vmem:[%s275 + $0x28] sm:$0xff] %vm468, %v400
        %475 = vst.msk [vmem:[%s275 + $0x30] sm:$0xff] %vm468, %v406
        %476 = vst.msk [vmem:[%s275 + $0x38] sm:$0xff] %vm468, %v410
        %477 = vst.msk [vmem:[%s275 + $0x40] sm:$0xff] %vm468, %v416
        %478 = vst.msk [vmem:[%s275 + $0x48] sm:$0xff] %vm468, %v420
        %479 = vst.msk [vmem:[%s275 + $0x50] sm:$0xff] %vm468, %v426
        %480 = vst.msk [vmem:[%s275 + $0x58] sm:$0xff] %vm468, %v430
        %481 = vst.msk [vmem:[%s275 + $0x60] sm:$0xff] %vm468, %v436
        %482 = vst.msk [vmem:[%s275 + $0x68] sm:$0xff] %vm468, %v440
        %483 = vst.msk [vmem:[%s275 + $0x70] sm:$0xff] %vm468, %v446
        %484 = vst.msk [vmem:[%s275 + $0x78] sm:$0xff] %vm468, %v450
        %v485 = vld [vmem:[%s3] sm:$0x3]
        %v487 = vsel %vm314, %v485, 0
        %489 = vmatprep.subr.bf16.mxu0 0
        %490 = vmatpush1.bf16.xpose.msra.mxu0 %v316
        %491 = vmatprep.subr.bf16.mxu0 0
        %492 = vmatpush1.bf16.xpose.msra.mxu0 %v319
        %493 = vmatprep.subr.bf16.mxu0 0
        %494 = vmatpush1.bf16.xpose.msra.mxu0 %v322
        %495 = vmatprep.subr.bf16.mxu0 0
        %496 = vmatpush1.bf16.xpose.msra.mxu0 %v325
        %497 = vmatprep.subr.bf16.mxu0 0
        %498 = vmatpush1.bf16.xpose.msra.mxu0 %v328
        %499 = vmatprep.subr.bf16.mxu0 0
        %500 = vmatpush1.bf16.xpose.msra.mxu0 %v331
        %501 = vmatprep.subr.bf16.mxu0 0
        %502 = vmatpush1.bf16.xpose.msra.mxu0 %v334
        %503 = vmatprep.subr.bf16.mxu0 0
        %504 = vmatpush1.bf16.xpose.msra.mxu0 %v337
        %505 = vmatprep.subr.bf16.mxu0 0
        %506 = vmatpush1.bf16.xpose.msra.mxu0 0
        %507 = vmatprep.subr.bf16.mxu0 0
        %508 = vmatpush1.bf16.xpose.msra.mxu0 0
        %509 = vmatprep.subr.bf16.mxu0 0
        %510 = vmatpush1.bf16.xpose.msra.mxu0 0
        %511 = vmatprep.subr.bf16.mxu0 0
        %512 = vmatpush1.bf16.xpose.msra.mxu0 0
        %513 = vmatprep.subr.bf16.mxu0 0
        %514 = vmatpush1.bf16.xpose.msra.mxu0 0
        %515 = vmatprep.subr.bf16.mxu0 0
        %516 = vmatpush1.bf16.xpose.msra.mxu0 0
        %517 = vmatprep.subr.bf16.mxu0 0
        %518 = vmatpush1.bf16.xpose.msra.mxu0 0
        %519 = vmatprep.subr.bf16.mxu0 0
        %520 = vmatpush1.bf16.xpose.msra.mxu0 0
        %521 = vmatprep.mubr.bf16.mxu0 0
        %522 = vmatmul.mubr.bf16.gmra.mrb[0].mxu0 %v487
        %v523 = vpop.f32.mrb[0].mxu0
        %v524 = vadd.f32 0.0, %v523
        %v525 = vpop.f32.mrb[0].mxu0
        %v526 = vpop.f32.mrb[0].mxu0
        %v527 = vpop.f32.mrb[0].mxu0
        %528 = vdwg.mxu0
        %529 = vst [vmem:[%s263] sm:$0xf] %v524
        %s530 = sand.u32 %s121, 1
        %s531 = scalar_lea.sflag [#allocation3], %s530
        %s532 = sand.u32 %s121, 1
        %s533 = smul.addr %s532, 128
        %s534 = scalar_lea.vmem [#allocation2], %s533
        %s535 = smul.u32 16, %s24
        %p536 = scmp.lt.s32.totalorder %s535, 31
        %s537 = scalar_select %p536, %s535, 31
        %s538 = smul.addr %s537, 8
        %s539 = scalar_lea.vmem %s5, %s538
        %s540 = sand.u32 %s173, 1
        %s541 = scalar_lea.sflag [#allocation5], %s540
        %s542 = sand.u32 %s173, 1
        %s543 = smul.addr %s542, 4
        %s544 = scalar_lea.vmem [#allocation4], %s543
        // Predicated region
        $region37: #{tpu_custom_call.1} parent=35 // pred_check
          %p545 = pneg %p131
        $region38: #{tpu_custom_call.1} parent=35 // pred_check_branch
          %547 = sbr.rel (%p545) target = $region40
        $region39: #{tpu_custom_call.1} parent=35 // pred_region
          %s548 = smul.u32 16, %s24
          %s550 = ssub.s32 2048, 2048
          %551 = vsyncadd %s531, %s550
          %s552 = smul.addr %s548, 128
          %s553 = scalar_lea.hbm %s4, %s552
          %s554 = sshll.u32 %s534, 4
          %s555 = int_to_ptr.vmem [resolvable:$true] %s554
          %560 = dma.vmem_to_hbm [thread:$0]  %s555, 2048, %s553, %s531, 128, 128, 8
        $region40: #{tpu_custom_call.1} parent=35 // pred_fallthru
          _
        // Predicated region
        $region41: #{tpu_custom_call.1} parent=35 // pred_check
          %p561 = pneg %p157
        $region42: #{tpu_custom_call.1} parent=35 // pred_check_branch
          %563 = sbr.rel (%p561) target = $region44
        $region43: #{tpu_custom_call.1} parent=35 // pred_region
          %s564 = smul.u32 16, %s24
        $region44: #{tpu_custom_call.1} parent=35 // pred_fallthru
          _
        // Predicated region
        $region45: #{tpu_custom_call.1} parent=35 // pred_check
          %p565 = pneg %p183
        $region46: #{tpu_custom_call.1} parent=35 // pred_check_branch
          %567 = sbr.rel (%p565) target = $region48
        $region47: #{tpu_custom_call.1} parent=35 // pred_region
          %s569 = ssub.s32 64, 64
          %570 = vsyncadd %s541, %s569
          %s571 = smul.addr %s24, 64
          %s572 = scalar_lea.hbm %s6, %s571
          %s574 = sshll.u32 %s544, 4
          %s575 = int_to_ptr.vmem [resolvable:$true] %s574
          %577 = dma.vmem_to_hbm [thread:$0]  %s575, 64, %s572, %s541
        $region48: #{tpu_custom_call.1} parent=35 // pred_fallthru
          _
      $region36: #{tpu_custom_call.1} parent=5 // pred_fallthru
        _
      %p578 = scmp.le.s32.totalorder 2, %s19
      // Predicated region
      $region49: #{tpu_custom_call.1} parent=5 // pred_check
        %p579 = pneg %p578
      $region50: #{tpu_custom_call.1} parent=5 // pred_check_branch
        %581 = sbr.rel (%p579) target = $region52
      $region51: #{tpu_custom_call.1} parent=5 // pred_region
        %s582 = ssub.s32 %s19, 2
        // Predicated region
        $region53: #{tpu_custom_call.1} parent=51 // pred_check
          %p583 = pneg %p137
        $region54: #{tpu_custom_call.1} parent=51 // pred_check_branch
          %585 = sbr.rel (%p583) target = $region56
        $region55: #{tpu_custom_call.1} parent=51 // pred_region
          %s586 = sand.u32 %s122, 1
          %s587 = scalar_lea.sflag [#allocation3], %s586
          %s588 = sand.u32 %s122, 1
          %s589 = smul.addr %s588, 128
          %s590 = scalar_lea.vmem [#allocation2], %s589
          %591 = dma.done %s587, 2048
        $region56: #{tpu_custom_call.1} parent=51 // pred_fallthru
          _
        // Predicated region
        $region57: #{tpu_custom_call.1} parent=51 // pred_check
          %p592 = pneg %p163
        $region58: #{tpu_custom_call.1} parent=51 // pred_check_branch
          %594 = sbr.rel (%p592) target = $region60
        $region59: #{tpu_custom_call.1} parent=51 // pred_region
          %s595 = smul.u32 16, %s25
          %p596 = scmp.lt.s32.totalorder %s595, 31
          %s597 = scalar_select %p596, %s595, 31
          %s598 = smul.addr %s597, 8
          %s599 = scalar_lea.vmem %s5, %s598
        $region60: #{tpu_custom_call.1} parent=51 // pred_fallthru
          _
        // Predicated region
        $region61: #{tpu_custom_call.1} parent=51 // pred_check
          %p600 = pneg %p189
        $region62: #{tpu_custom_call.1} parent=51 // pred_check_branch
          %602 = sbr.rel (%p600) target = $region64
        $region63: #{tpu_custom_call.1} parent=51 // pred_region
          %s603 = sand.u32 %s174, 1
          %s604 = scalar_lea.sflag [#allocation5], %s603
          %s605 = sand.u32 %s174, 1
          %s606 = smul.addr %s605, 4
          %s607 = scalar_lea.vmem [#allocation4], %s606
          %608 = dma.done %s604, 64
        $region64: #{tpu_custom_call.1} parent=51 // pred_fallthru
          _
      $region52: #{tpu_custom_call.1} parent=5 // pred_fallthru
        _
    $region6: #{tpu_custom_call.1} parent=1 // loop_footer
      %s23 = sadd.s32 1, %s19
    $region7: #{tpu_custom_call.1} parent=1 // loop_footer_branch
      %18 = sbr.rel target = $region3
    $region8: #{tpu_custom_call.1} parent=1 // loop_exit
      _
    %609 = vsyncpa [#allocation3], 1
    %s610 = scalar_lea.sflag [#allocation3], 1
    %611 = vsyncpa %s610, 1
    %612 = vsyncpa [#allocation5], 1
    %s613 = scalar_lea.sflag [#allocation5], 1
    %614 = vsyncpa %s613, 1

</llo_original>
